<compile_context>
chip_gen: v6e
topology: v6e:2x2x1
jax: 0.10.0
libtpu: 0.0.40
codegen_flags: <defaults>
</compile_context>

<pallas_src>
import jax
import jax.numpy as jnp
from jax.experimental import pallas as pl
from jax.experimental.pallas import tpu as pltpu


# ----------------------------------------------------------------------------
# Fused ODE kernel: grid axis = time step, state carried in VMEM scratch.
#   step 0   : x_state <- x0,                      out[0] = x0
#   step t>0 : x_state <- x_state + dt_t * dxdt,   out[t] = x_state
# dxdt(x) = f(x) + g(x, adj)
#   f : Linear(F->H) -> ReLU -> Linear(H->F)
#   g : Linear(F->H) -> ReLU -> Linear(H->H); h = adj @ h;
#       Linear(H->H) -> ReLU -> Linear(H->F)
# ----------------------------------------------------------------------------
def _ode_kernel(dts_ref,                              # scalar prefetch (SMEM)
                x0_ref, adj_ref,
                w1c_ref, b1c_ref,                     # fused [f.w1 | g.f1.w1]
                fw2_ref, fb2_ref,
                g1w2_ref, g1b2_ref,
                g2w1_ref, g2b1_ref, g2w2_ref, g2b2_ref,
                out_ref,                              # (1, B*N, F)
                x_state, mix):                        # VMEM scratch
    t = pl.program_id(0)

    H = g1b2_ref.shape[-1]
    N = adj_ref.shape[0]
    BN = x_state.shape[0]
    B = BN // N

    @pl.when(t == 0)
    def _():
        x_state[...] = x0_ref[...]

    @pl.when(t > 0)
    def _():
        x = x_state[...]                              # (BN, F)
        adj = adj_ref[...]                            # (N, N)

        # Fused first-layer projections for f and g.f1 (shared LHS x).
        h = jnp.dot(x, w1c_ref[...],
                    preferred_element_type=jnp.float32) + b1c_ref[...]
        h = jnp.maximum(h, 0.0)                       # (BN, 2H)
        hf = h[:, :H]                                 # f path
        hg = h[:, H:]                                 # g path

        # f second layer.
        x_self = jnp.dot(hf, fw2_ref[...],
                         preferred_element_type=jnp.float32) + fb2_ref[...]

        # g.f1 second layer.
        hg = jnp.dot(hg, g1w2_ref[...],
                     preferred_element_type=jnp.float32) + g1b2_ref[...]

        # Adjacency mix: adj @ hg_b per batch (adj is batch-shared).
        for b in range(B):
            mix[b * N:(b + 1) * N, :] = jnp.dot(
                adj, hg[b * N:(b + 1) * N, :],
                preferred_element_type=jnp.float32)
        hgm = mix[...]                                # (BN, H)

        # g.f2.
        h2 = jnp.maximum(
            jnp.dot(hgm, g2w1_ref[...],
                    preferred_element_type=jnp.float32) + g2b1_ref[...], 0.0)
        x_neigh = jnp.dot(h2, g2w2_ref[...],
                          preferred_element_type=jnp.float32) + g2b2_ref[...]

        dt = dts_ref[t]
        x_state[...] = x + dt * (x_self + x_neigh)

    out_ref[0] = x_state[...]


def backbone_ode_forward(tspan, x, adj_w, params, method="euler"):
    assert method == "euler"
    B, L, N, F = x.shape
    H = params["f_w1"].shape[1]
    T = tspan.shape[0]
    BN = B * N

    # init_enc in plain XLA (one-off tiny GEMM; not worth its own pallas_call):
    # Linear(L->H) -> ReLU -> Linear(H->1), applied over the lookback dim.
    x_bnfl = jnp.transpose(x, (0, 2, 3, 1)).reshape(B * N * F, L)
    h = jnp.maximum(x_bnfl @ params["enc_w1"] + params["enc_b1"], 0.0)
    x0 = (h @ params["enc_w2"] + params["enc_b2"]).reshape(BN, F)

    # Fuse the two first-layer weights (shared LHS x) into one matmul.
    w1c = jnp.concatenate([params["f_w1"], params["g1_w1"]], axis=1)   # (F, 2H)
    b1c = jnp.concatenate([params["f_b1"], params["g1_b1"]], axis=1)   # (1, 2H)

    # dts[0] is unused (step 0 just emits x0); dts[t] = tspan[t] - tspan[t-1].
    dts = jnp.concatenate(
        [jnp.zeros((1,), jnp.float32), (tspan[1:] - tspan[:-1]).astype(jnp.float32)])

    def _const_spec(shape):
        zeros = (0,) * len(shape)
        return pl.BlockSpec(shape, lambda t, dts_ref: zeros)

    grid_spec = pltpu.PrefetchScalarGridSpec(
        num_scalar_prefetch=1,
        grid=(T,),
        in_specs=[
            _const_spec((BN, F)),                      # x0
            _const_spec((N, N)),                       # adj
            _const_spec((F, 2 * H)), _const_spec((1, 2 * H)),   # fused w1/b1
            _const_spec((H, F)), _const_spec((1, F)),           # f.w2 / b2
            _const_spec((H, H)), _const_spec((1, H)),           # g.f1.w2 / b2
            _const_spec((H, H)), _const_spec((1, H)),           # g.f2.w1 / b1
            _const_spec((H, F)), _const_spec((1, F)),           # g.f2.w2 / b2
        ],
        out_specs=pl.BlockSpec((1, BN, F), lambda t, dts_ref: (t, 0, 0)),
        scratch_shapes=[
            pltpu.VMEM((BN, F), jnp.float32),          # carried ODE state
            pltpu.VMEM((BN, H), jnp.float32),          # adjacency-mix buffer
        ],
    )

    out = pl.pallas_call(
        _ode_kernel,
        grid_spec=grid_spec,
        out_shape=jax.ShapeDtypeStruct((T, BN, F), jnp.float32),
        compiler_params=pltpu.CompilerParams(
            dimension_semantics=("arbitrary",)),       # sequential time carry
    )(
        dts, x0, adj_w, w1c, b1c,
        params["f_w2"], params["f_b2"],
        params["g1_w2"], params["g1_b2"],
        params["g2_w1"], params["g2_b1"],
        params["g2_w2"], params["g2_b2"],
    )

    out = out.reshape(T, B, N, F)
    return jnp.transpose(out, (1, 0, 2, 3))            # (B, T, N, F)


# ----------------------------------------------------------------------------
# Pure-JAX reference (for correctness check).
# ----------------------------------------------------------------------------
def _reference_forward(tspan, x, adj_w, p):
    xp = jnp.transpose(x, (0, 2, 3, 1))                # (B, N, F, L)
    h = jnp.maximum(xp @ p["enc_w1"] + p["enc_b1"], 0.0)
    y = (h @ p["enc_w2"] + p["enc_b2"])[..., 0]        # (B, N, F)

    def dxdt(y):
        hf = jnp.maximum(y @ p["f_w1"] + p["f_b1"], 0.0)
        x_self = hf @ p["f_w2"] + p["f_b2"]
        hg = jnp.maximum(y @ p["g1_w1"] + p["g1_b1"], 0.0)
        hg = hg @ p["g1_w2"] + p["g1_b2"]
        hg = jnp.einsum("ij,bjh->bih", adj_w, hg)
        h2 = jnp.maximum(hg @ p["g2_w1"] + p["g2_b1"], 0.0)
        x_neigh = h2 @ p["g2_w2"] + p["g2_b2"]
        return x_self + x_neigh

    ys = [y]
    for t in range(1, tspan.shape[0]):
        dt = tspan[t] - tspan[t - 1]
        ys.append(ys[-1] + dt * dxdt(ys[-1]))
    out = jnp.stack(ys, axis=0)                        # (T, B, N, F)
    return jnp.transpose(out, (1, 0, 2, 3))


# ----------------------------------------------------------------------------
# Deterministic parameter init (PyTorch nn.Linear-style uniform bounds).
# Weights stored as [in, out] so the kernel does x @ W + b.
# ----------------------------------------------------------------------------
def make_params(key, lookback, feature_dim, hid):
    def linear(k, fan_in, fan_out):
        k1, k2 = jax.random.split(k)
        bound = 1.0 / float(fan_in) ** 0.5
        w = jax.random.uniform(k1, (fan_in, fan_out), jnp.float32, -bound, bound)
        b = jax.random.uniform(k2, (1, fan_out), jnp.float32, -bound, bound)
        return w, b

    keys = jax.random.split(key, 8)
    p = {}
    p["enc_w1"], p["enc_b1"] = linear(keys[0], lookback, hid)
    p["enc_w2"], p["enc_b2"] = linear(keys[1], hid, 1)
    p["f_w1"], p["f_b1"] = linear(keys[2], feature_dim, hid)
    p["f_w2"], p["f_b2"] = linear(keys[3], hid, feature_dim)
    p["g1_w1"], p["g1_b1"] = linear(keys[4], feature_dim, hid)
    p["g1_w2"], p["g1_b2"] = linear(keys[5], hid, hid)
    p["g2_w1"], p["g2_b1"] = linear(keys[6], hid, hid)
    p["g2_w2"], p["g2_b2"] = linear(keys[7], hid, feature_dim)
    return p


if __name__ == "__main__":
    B, L, N, F, H, T = 2, 8, 16, 8, 32, 5   # batch, lookback, nodes, feature, hid, steps

    key = jax.random.PRNGKey(0)
    kp, kx, ka = jax.random.split(key, 3)

    params = make_params(kp, L, F, H)
    x = jax.random.normal(kx, (B, L, N, F), jnp.float32)       # [B, lookback, N, feat]
    adj_w = jax.random.uniform(ka, (N, N), jnp.float32)
    adj_w = adj_w / jnp.sum(adj_w, axis=1, keepdims=True)      # row-normalized adjacency
    tspan = jnp.linspace(0.0, 1.0, T).astype(jnp.float32)

    out = backbone_ode_forward(tspan, x, adj_w, params, method="euler")
    out = jax.block_until_ready(out)

    assert out.shape == (B, T, N, F)
    assert bool(jnp.all(jnp.isfinite(out)))

    ref = jax.block_until_ready(_reference_forward(tspan, x, adj_w, params))
    assert bool(jnp.allclose(out, ref, atol=5e-2, rtol=5e-2)), "mismatch vs JAX reference"

    print("KERNEL_OK")
</pallas_src>

<mosaic_0001>
module attributes {stable_mosaic.version = 11 : i64} {
  func.func @_ode_kernel(%arg0: i32, %arg1: memref<5xf32, #tpu.memory_space<smem>>, %arg2: memref<32x8xf32, #tpu.memory_space<vmem>>, %arg3: memref<16x16xf32, #tpu.memory_space<vmem>>, %arg4: memref<8x64xf32, #tpu.memory_space<vmem>>, %arg5: memref<1x64xf32, #tpu.memory_space<vmem>>, %arg6: memref<32x8xf32, #tpu.memory_space<vmem>>, %arg7: memref<1x8xf32, #tpu.memory_space<vmem>>, %arg8: memref<32x32xf32, #tpu.memory_space<vmem>>, %arg9: memref<1x32xf32, #tpu.memory_space<vmem>>, %arg10: memref<32x32xf32, #tpu.memory_space<vmem>>, %arg11: memref<1x32xf32, #tpu.memory_space<vmem>>, %arg12: memref<32x8xf32, #tpu.memory_space<vmem>>, %arg13: memref<1x8xf32, #tpu.memory_space<vmem>>, %arg14: memref<1x32x8xf32, #tpu.memory_space<vmem>>, %arg15: memref<32x8xf32, #tpu.memory_space<vmem>>, %arg16: memref<32x32xf32, #tpu.memory_space<vmem>>) attributes {dimension_semantics = [#tpu.dimension_semantics<arbitrary>], iteration_bounds = array<i64: 5>, scalar_prefetch = 1 : i64, scratch_operands = 2 : i64, tpu.core_type = #tpu.core_type<tc>, window_params = [{pipeline_mode = #tpu.pipeline_mode<synchronous>, transform_indices = @transform_0, window_bounds = array<i64: 32, 8>}, {pipeline_mode = #tpu.pipeline_mode<synchronous>, transform_indices = @transform_1, window_bounds = array<i64: 16, 16>}, {pipeline_mode = #tpu.pipeline_mode<synchronous>, transform_indices = @transform_2, window_bounds = array<i64: 8, 64>}, {pipeline_mode = #tpu.pipeline_mode<synchronous>, transform_indices = @transform_3, window_bounds = array<i64: 1, 64>}, {pipeline_mode = #tpu.pipeline_mode<synchronous>, transform_indices = @transform_4, window_bounds = array<i64: 32, 8>}, {pipeline_mode = #tpu.pipeline_mode<synchronous>, transform_indices = @transform_5, window_bounds = array<i64: 1, 8>}, {pipeline_mode = #tpu.pipeline_mode<synchronous>, transform_indices = @transform_6, window_bounds = array<i64: 32, 32>}, {pipeline_mode = #tpu.pipeline_mode<synchronous>, transform_indices = @transform_7, window_bounds = array<i64: 1, 32>}, {pipeline_mode = #tpu.pipeline_mode<synchronous>, transform_indices = @transform_8, window_bounds = array<i64: 32, 32>}, {pipeline_mode = #tpu.pipeline_mode<synchronous>, transform_indices = @transform_9, window_bounds = array<i64: 1, 32>}, {pipeline_mode = #tpu.pipeline_mode<synchronous>, transform_indices = @transform_10, window_bounds = array<i64: 32, 8>}, {pipeline_mode = #tpu.pipeline_mode<synchronous>, transform_indices = @transform_11, window_bounds = array<i64: 1, 8>}, {transform_indices = @transform_12, window_bounds = array<i64: 1, 32, 8>}]} {
    %c0_i32 = arith.constant 0 : i32
    %0 = arith.cmpi eq, %arg0, %c0_i32 : i32
    %1 = arith.extui %0 : i1 to i32
    %c0_i32_0 = arith.constant 0 : i32
    %2 = arith.cmpi ne, %1, %c0_i32_0 : i32
    scf.if %2 {
      %c0_7 = arith.constant 0 : index
      %c0_8 = arith.constant 0 : index
      %10 = vector.load %arg2[%c0_7, %c0_8] : memref<32x8xf32, #tpu.memory_space<vmem>>, vector<32x8xf32>
      %c0_9 = arith.constant 0 : index
      %c0_10 = arith.constant 0 : index
      %11 = vector.load %arg15[%c0_9, %c0_10] : memref<32x8xf32, #tpu.memory_space<vmem>>, vector<32x8xf32>
      tpu.vector_store %arg15[%c0_9, %c0_10], %10 {strides = array<i32>} : memref<32x8xf32, #tpu.memory_space<vmem>>, vector<32x8xf32>,
    } else {
    }
    %c0_i32_1 = arith.constant 0 : i32
    %3 = arith.cmpi sgt, %arg0, %c0_i32_1 : i32
    %4 = arith.extui %3 : i1 to i32
    %c0_i32_2 = arith.constant 0 : i32
    %5 = arith.cmpi ne, %4, %c0_i32_2 : i32
    scf.if %5 {
      %c0_7 = arith.constant 0 : index
      %c0_8 = arith.constant 0 : index
      %10 = vector.load %arg15[%c0_7, %c0_8] : memref<32x8xf32, #tpu.memory_space<vmem>>, vector<32x8xf32>
      %c0_9 = arith.constant 0 : index
      %c0_10 = arith.constant 0 : index
      %11 = vector.load %arg3[%c0_9, %c0_10] : memref<16x16xf32, #tpu.memory_space<vmem>>, vector<16x16xf32>
      %c0_11 = arith.constant 0 : index
      %c0_12 = arith.constant 0 : index
      %12 = vector.load %arg4[%c0_11, %c0_12] : memref<8x64xf32, #tpu.memory_space<vmem>>, vector<8x64xf32>
      %cst = arith.constant dense<0.000000e+00> : vector<32x64xf32>
      %13 = tpu.matmul %10, %12, %cst {dimension_numbers = #tpu.dot_dimension_numbers<[1], [0], [0], [1], [0, 0, 1, 1], [], []>} : vector<32x8xf32>, vector<8x64xf32>, vector<32x64xf32> -> vector<32x64xf32>
      %c0_13 = arith.constant 0 : index
      %c0_14 = arith.constant 0 : index
      %14 = vector.load %arg5[%c0_13, %c0_14] : memref<1x64xf32, #tpu.memory_space<vmem>>, vector<1x64xf32>
      %15 = vector.broadcast %14 : vector<1x64xf32> to vector<32x64xf32>
      %16 = arith.addf %13, %15 : vector<32x64xf32>
      %cst_15 = arith.constant 0.000000e+00 : f32
      %17 = vector.broadcast %cst_15 : f32 to vector<32x64xf32>
      %18 = arith.maximumf %16, %17 : vector<32x64xf32>
      %19 = vector.extract_strided_slice %18 {offsets = [0, 0], sizes = [32, 32], strides = [1, 1]} : vector<32x64xf32> to vector<32x32xf32>
      %20 = vector.extract_strided_slice %18 {offsets = [0, 32], sizes = [32, 32], strides = [1, 1]} : vector<32x64xf32> to vector<32x32xf32>
      %c0_16 = arith.constant 0 : index
      %c0_17 = arith.constant 0 : index
      %21 = vector.load %arg6[%c0_16, %c0_17] : memref<32x8xf32, #tpu.memory_space<vmem>>, vector<32x8xf32>
      %cst_18 = arith.constant dense<0.000000e+00> : vector<32x8xf32>
      %22 = tpu.matmul %19, %21, %cst_18 {dimension_numbers = #tpu.dot_dimension_numbers<[1], [0], [0], [1], [0, 0, 1, 1], [], []>} : vector<32x32xf32>, vector<32x8xf32>, vector<32x8xf32> -> vector<32x8xf32>
      %c0_19 = arith.constant 0 : index
      %c0_20 = arith.constant 0 : index
      %23 = vector.load %arg7[%c0_19, %c0_20] : memref<1x8xf32, #tpu.memory_space<vmem>>, vector<1x8xf32>
      %24 = vector.broadcast %23 : vector<1x8xf32> to vector<32x8xf32>
      %25 = arith.addf %22, %24 : vector<32x8xf32>
      %c0_21 = arith.constant 0 : index
      %c0_22 = arith.constant 0 : index
      %26 = vector.load %arg8[%c0_21, %c0_22] : memref<32x32xf32, #tpu.memory_space<vmem>>, vector<32x32xf32>
      %cst_23 = arith.constant dense<0.000000e+00> : vector<32x32xf32>
      %27 = tpu.matmul %20, %26, %cst_23 {dimension_numbers = #tpu.dot_dimension_numbers<[1], [0], [0], [1], [0, 0, 1, 1], [], []>} : vector<32x32xf32>, vector<32x32xf32>, vector<32x32xf32> -> vector<32x32xf32>
      %c0_24 = arith.constant 0 : index
      %c0_25 = arith.constant 0 : index
      %28 = vector.load %arg9[%c0_24, %c0_25] : memref<1x32xf32, #tpu.memory_space<vmem>>, vector<1x32xf32>
      %29 = vector.broadcast %28 : vector<1x32xf32> to vector<32x32xf32>
      %30 = arith.addf %27, %29 : vector<32x32xf32>
      %31 = vector.extract_strided_slice %30 {offsets = [0, 0], sizes = [16, 32], strides = [1, 1]} : vector<32x32xf32> to vector<16x32xf32>
      %cst_26 = arith.constant dense<0.000000e+00> : vector<16x32xf32>
      %32 = tpu.matmul %11, %31, %cst_26 {dimension_numbers = #tpu.dot_dimension_numbers<[1], [0], [0], [1], [0, 0, 1, 1], [], []>} : vector<16x16xf32>, vector<16x32xf32>, vector<16x32xf32> -> vector<16x32xf32>
      %c0_27 = arith.constant 0 : index
      %c0_28 = arith.constant 0 : index
      %33 = vector.load %arg16[%c0_27, %c0_28] : memref<32x32xf32, #tpu.memory_space<vmem>>, vector<16x32xf32>
      tpu.vector_store %arg16[%c0_27, %c0_28], %32 {strides = array<i32>} : memref<32x32xf32, #tpu.memory_space<vmem>>, vector<16x32xf32>,
      %34 = vector.extract_strided_slice %30 {offsets = [16, 0], sizes = [16, 32], strides = [1, 1]} : vector<32x32xf32> to vector<16x32xf32>
      %cst_29 = arith.constant dense<0.000000e+00> : vector<16x32xf32>
      %35 = tpu.matmul %11, %34, %cst_29 {dimension_numbers = #tpu.dot_dimension_numbers<[1], [0], [0], [1], [0, 0, 1, 1], [], []>} : vector<16x16xf32>, vector<16x32xf32>, vector<16x32xf32> -> vector<16x32xf32>
      %c16 = arith.constant 16 : index
      %c0_30 = arith.constant 0 : index
      %36 = vector.load %arg16[%c16, %c0_30] : memref<32x32xf32, #tpu.memory_space<vmem>>, vector<16x32xf32>
      tpu.vector_store %arg16[%c16, %c0_30], %35 {strides = array<i32>} : memref<32x32xf32, #tpu.memory_space<vmem>>, vector<16x32xf32>,
      %c0_31 = arith.constant 0 : index
      %c0_32 = arith.constant 0 : index
      %37 = vector.load %arg16[%c0_31, %c0_32] : memref<32x32xf32, #tpu.memory_space<vmem>>, vector<32x32xf32>
      %c0_33 = arith.constant 0 : index
      %c0_34 = arith.constant 0 : index
      %38 = vector.load %arg10[%c0_33, %c0_34] : memref<32x32xf32, #tpu.memory_space<vmem>>, vector<32x32xf32>
      %cst_35 = arith.constant dense<0.000000e+00> : vector<32x32xf32>
      %39 = tpu.matmul %37, %38, %cst_35 {dimension_numbers = #tpu.dot_dimension_numbers<[1], [0], [0], [1], [0, 0, 1, 1], [], []>} : vector<32x32xf32>, vector<32x32xf32>, vector<32x32xf32> -> vector<32x32xf32>
      %c0_36 = arith.constant 0 : index
      %c0_37 = arith.constant 0 : index
      %40 = vector.load %arg11[%c0_36, %c0_37] : memref<1x32xf32, #tpu.memory_space<vmem>>, vector<1x32xf32>
      %41 = vector.broadcast %40 : vector<1x32xf32> to vector<32x32xf32>
      %42 = arith.addf %39, %41 : vector<32x32xf32>
      %cst_38 = arith.constant 0.000000e+00 : f32
      %43 = vector.broadcast %cst_38 : f32 to vector<32x32xf32>
      %44 = arith.maximumf %42, %43 : vector<32x32xf32>
      %c0_39 = arith.constant 0 : index
      %c0_40 = arith.constant 0 : index
      %45 = vector.load %arg12[%c0_39, %c0_40] : memref<32x8xf32, #tpu.memory_space<vmem>>, vector<32x8xf32>
      %cst_41 = arith.constant dense<0.000000e+00> : vector<32x8xf32>
      %46 = tpu.matmul %44, %45, %cst_41 {dimension_numbers = #tpu.dot_dimension_numbers<[1], [0], [0], [1], [0, 0, 1, 1], [], []>} : vector<32x32xf32>, vector<32x8xf32>, vector<32x8xf32> -> vector<32x8xf32>
      %c0_42 = arith.constant 0 : index
      %c0_43 = arith.constant 0 : index
      %47 = vector.load %arg13[%c0_42, %c0_43] : memref<1x8xf32, #tpu.memory_space<vmem>>, vector<1x8xf32>
      %48 = vector.broadcast %47 : vector<1x8xf32> to vector<32x8xf32>
      %49 = arith.addf %46, %48 : vector<32x8xf32>
      %50 = arith.index_cast %arg0 : i32 to index
      %51 = memref.load %arg1[%50] : memref<5xf32, #tpu.memory_space<smem>>
      %52 = arith.addf %25, %49 : vector<32x8xf32>
      %53 = vector.broadcast %51 : f32 to vector<32x8xf32>
      %54 = arith.mulf %53, %52 : vector<32x8xf32>
      %55 = arith.addf %10, %54 : vector<32x8xf32>
      %c0_44 = arith.constant 0 : index
      %c0_45 = arith.constant 0 : index
      %56 = vector.load %arg15[%c0_44, %c0_45] : memref<32x8xf32, #tpu.memory_space<vmem>>, vector<32x8xf32>
      tpu.vector_store %arg15[%c0_44, %c0_45], %55 {strides = array<i32>} : memref<32x8xf32, #tpu.memory_space<vmem>>, vector<32x8xf32>,
    } else {
    }
    %c0 = arith.constant 0 : index
    %c0_3 = arith.constant 0 : index
    %6 = vector.load %arg15[%c0, %c0_3] : memref<32x8xf32, #tpu.memory_space<vmem>>, vector<32x8xf32>
    %c0_4 = arith.constant 0 : index
    %c0_5 = arith.constant 0 : index
    %c0_6 = arith.constant 0 : index
    %7 = vector.load %arg14[%c0_4, %c0_5, %c0_6] : memref<1x32x8xf32, #tpu.memory_space<vmem>>, vector<1x32x8xf32>
    %8 = vector.shape_cast %7 : vector<1x32x8xf32> to vector<32x8xf32>
    %9 = vector.shape_cast %6 : vector<32x8xf32> to vector<1x32x8xf32>
    tpu.vector_store %arg14[%c0_4, %c0_5, %c0_6], %9 {strides = array<i32>} : memref<1x32x8xf32, #tpu.memory_space<vmem>>, vector<1x32x8xf32>,
    return
  }
  func.func @transform_0(%arg0: i32, %arg1: memref<5xf32, #tpu.memory_space<smem>>) -> (i32, i32) {
    %c0_i32 = arith.constant 0 : i32
    %c0_i32_0 = arith.constant 0 : i32
    %c0_i32_1 = arith.constant 0 : i32
    return %c0_i32, %c0_i32_0 : i32, i32
  }
  func.func @transform_1(%arg0: i32, %arg1: memref<5xf32, #tpu.memory_space<smem>>) -> (i32, i32) {
    %c0_i32 = arith.constant 0 : i32
    %c0_i32_0 = arith.constant 0 : i32
    %c0_i32_1 = arith.constant 0 : i32
    return %c0_i32, %c0_i32_0 : i32, i32
  }
  func.func @transform_2(%arg0: i32, %arg1: memref<5xf32, #tpu.memory_space<smem>>) -> (i32, i32) {
    %c0_i32 = arith.constant 0 : i32
    %c0_i32_0 = arith.constant 0 : i32
    %c0_i32_1 = arith.constant 0 : i32
    return %c0_i32, %c0_i32_0 : i32, i32
  }
  func.func @transform_3(%arg0: i32, %arg1: memref<5xf32, #tpu.memory_space<smem>>) -> (i32, i32) {
    %c0_i32 = arith.constant 0 : i32
    %c0_i32_0 = arith.constant 0 : i32
    %c0_i32_1 = arith.constant 0 : i32
    return %c0_i32, %c0_i32_0 : i32, i32
  }
  func.func @transform_4(%arg0: i32, %arg1: memref<5xf32, #tpu.memory_space<smem>>) -> (i32, i32) {
    %c0_i32 = arith.constant 0 : i32
    %c0_i32_0 = arith.constant 0 : i32
    %c0_i32_1 = arith.constant 0 : i32
    return %c0_i32, %c0_i32_0 : i32, i32
  }
  func.func @transform_5(%arg0: i32, %arg1: memref<5xf32, #tpu.memory_space<smem>>) -> (i32, i32) {
    %c0_i32 = arith.constant 0 : i32
    %c0_i32_0 = arith.constant 0 : i32
    %c0_i32_1 = arith.constant 0 : i32
    return %c0_i32, %c0_i32_0 : i32, i32
  }
  func.func @transform_6(%arg0: i32, %arg1: memref<5xf32, #tpu.memory_space<smem>>) -> (i32, i32) {
    %c0_i32 = arith.constant 0 : i32
    %c0_i32_0 = arith.constant 0 : i32
    %c0_i32_1 = arith.constant 0 : i32
    return %c0_i32, %c0_i32_0 : i32, i32
  }
  func.func @transform_7(%arg0: i32, %arg1: memref<5xf32, #tpu.memory_space<smem>>) -> (i32, i32) {
    %c0_i32 = arith.constant 0 : i32
    %c0_i32_0 = arith.constant 0 : i32
    %c0_i32_1 = arith.constant 0 : i32
    return %c0_i32, %c0_i32_0 : i32, i32
  }
  func.func @transform_8(%arg0: i32, %arg1: memref<5xf32, #tpu.memory_space<smem>>) -> (i32, i32) {
    %c0_i32 = arith.constant 0 : i32
    %c0_i32_0 = arith.constant 0 : i32
    %c0_i32_1 = arith.constant 0 : i32
    return %c0_i32, %c0_i32_0 : i32, i32
  }
  func.func @transform_9(%arg0: i32, %arg1: memref<5xf32, #tpu.memory_space<smem>>) -> (i32, i32) {
    %c0_i32 = arith.constant 0 : i32
    %c0_i32_0 = arith.constant 0 : i32
    %c0_i32_1 = arith.constant 0 : i32
    return %c0_i32, %c0_i32_0 : i32, i32
  }
  func.func @transform_10(%arg0: i32, %arg1: memref<5xf32, #tpu.memory_space<smem>>) -> (i32, i32) {
    %c0_i32 = arith.constant 0 : i32
    %c0_i32_0 = arith.constant 0 : i32
    %c0_i32_1 = arith.constant 0 : i32
    return %c0_i32, %c0_i32_0 : i32, i32
  }
  func.func @transform_11(%arg0: i32, %arg1: memref<5xf32, #tpu.memory_space<smem>>) -> (i32, i32) {
    %c0_i32 = arith.constant 0 : i32
    %c0_i32_0 = arith.constant 0 : i32
    %c0_i32_1 = arith.constant 0 : i32
    return %c0_i32, %c0_i32_0 : i32, i32
  }
  func.func @transform_12(%arg0: i32, %arg1: memref<5xf32, #tpu.memory_space<smem>>) -> (i32, i32, i32) {
    %c0_i32 = arith.constant 0 : i32
    %c0_i32_0 = arith.constant 0 : i32
    %c0_i32_1 = arith.constant 0 : i32
    return %arg0, %c0_i32, %c0_i32_0 : i32, i32, i32
  }
}

</mosaic_0001>

<llo_original>
// kernel: tpu_custom_call.1
$region0: #{tpu_custom_call.1}
  #allocation0 [shape = 'u32[]', space=smem, size = 0x4, offset = 0x4, fixed_abs, tag = 'smem constant byte address 0x4 - core index']
  #allocation1 [shape = 'u32[144,128]{1,0:T(1,128)}', space=vmem, size = 0x12000, scoped, tag = 'internal scratch']
  #allocation2 [shape = 'f32[32,8]{1,0:T(8,128)}', space=vmem, size = 0x4000, scoped, tag = 'scratch operand']
  #allocation3 [shape = 'f32[32,32]{1,0:T(8,128)}', space=vmem, size = 0x4000, scoped, tag = 'scratch operand']
  #allocation4 [shape = 's32[1]{0}', space=sflag, size = 0x4, scoped, tag = 'scoped memory for tpu_custom_call.1']
  #allocation5 [shape = 'u8[512]{0}', space=smem, size = 0x200, scoped, tag = 'prefetched SMEM operand 0']
  %s0 = inlined_call_operand.vmem [shape: f32[5], index: 0, kind: input, shape index: {}]
  %s1 = inlined_call_operand.vmem [shape: f32[32,8], index: 1, kind: input, shape index: {}]
  %s2 = inlined_call_operand.vmem [shape: f32[16,16], index: 2, kind: input, shape index: {}]
  %s3 = inlined_call_operand.vmem [shape: f32[8,64], index: 3, kind: input, shape index: {}]
  %s4 = inlined_call_operand.vmem [shape: f32[1,64], index: 4, kind: input, shape index: {}]
  %s5 = inlined_call_operand.vmem [shape: f32[32,8], index: 5, kind: input, shape index: {}]
  %s6 = inlined_call_operand.vmem [shape: f32[1,8], index: 6, kind: input, shape index: {}]
  %s7 = inlined_call_operand.vmem [shape: f32[32,32], index: 7, kind: input, shape index: {}]
  %s8 = inlined_call_operand.vmem [shape: f32[1,32], index: 8, kind: input, shape index: {}]
  %s9 = inlined_call_operand.vmem [shape: f32[32,32], index: 9, kind: input, shape index: {}]
  %s10 = inlined_call_operand.vmem [shape: f32[1,32], index: 10, kind: input, shape index: {}]
  %s11 = inlined_call_operand.vmem [shape: f32[32,8], index: 11, kind: input, shape index: {}]
  %s12 = inlined_call_operand.vmem [shape: f32[1,8], index: 12, kind: input, shape index: {}]
  %s13 = inlined_call_operand.vmem [shape: f32[5,32,8], index: 13, kind: output, shape index: {}]
  %s14 = sld [smem:[#allocation0]]
  $region89: #{tpu_custom_call.1} parent=0
    _
  %s16 = ssub.s32 1, %s14
  %s17 = scalar_select 0, %s16, %s14
  %s18 = sshll.u32 %s0, 4
  %s19 = int_to_ptr.vmem [resolvable:$true] %s18
  %21 = dma.vmem_to_smem %s19, 16, [#allocation5], [#allocation4]
  %22 = dma.done [#allocation4], 16
  %23 = sfence
  loop: start=0, step=1, limit=7
  $region2: #{tpu_custom_call.1} parent=0 // loop_pre_header
    _
  $region3: #{tpu_custom_call.1} parent=0 // loop_header
    %s25 = sphi 0, %s29
    %p26 = scmp.ge.s32.totalorder %s25, 7
    %s33 = sphi 0, %s33
    %s35 = sphi 0, %s33
    %s36 = sphi 0, %s35
    %s50 = sphi 0, %s36
    %s54 = sphi 0, %s54
    %s56 = sphi 0, %s54
    %s57 = sphi 0, %s56
    %s71 = sphi 0, %s57
    %s75 = sphi 0, %s75
    %s77 = sphi 0, %s75
    %s78 = sphi 0, %s77
    %s92 = sphi 0, %s78
    %s96 = sphi 0, %s96
    %s98 = sphi 0, %s96
    %s99 = sphi 0, %s98
    %s113 = sphi 0, %s99
    %s117 = sphi 0, %s117
    %s119 = sphi 0, %s117
    %s120 = sphi 0, %s119
    %s134 = sphi 0, %s120
    %s138 = sphi 0, %s138
    %s140 = sphi 0, %s138
    %s141 = sphi 0, %s140
    %s155 = sphi 0, %s141
    %s159 = sphi 0, %s159
    %s161 = sphi 0, %s159
    %s162 = sphi 0, %s161
    %s176 = sphi 0, %s162
    %s180 = sphi 0, %s180
    %s182 = sphi 0, %s180
    %s183 = sphi 0, %s182
    %s197 = sphi 0, %s183
    %s201 = sphi 0, %s201
    %s203 = sphi 0, %s201
    %s204 = sphi 0, %s203
    %s218 = sphi 0, %s204
    %s222 = sphi 0, %s222
    %s224 = sphi 0, %s222
    %s225 = sphi 0, %s224
    %s239 = sphi 0, %s225
    %s243 = sphi 0, %s243
    %s245 = sphi 0, %s243
    %s246 = sphi 0, %s245
    %s260 = sphi 0, %s246
    %s264 = sphi 0, %s264
    %s266 = sphi 0, %s264
    %s267 = sphi 0, %s266
    %s281 = sphi 0, %s267
    %s287 = sphi 0, %s289
    %s290 = sphi 0, %s287
    %s291 = sphi 0, %s290
    %s307 = sphi 0, %s291
  $region4: #{tpu_custom_call.1} parent=0 // loop_header_branch
    %28 = sbr.rel (%p26) target = $region8
  $region5: #{tpu_custom_call.1} parent=0 // loop_body
    %s30 = ssub.s32 %s25, 1
    %s31 = ssub.s32 %s25, 2
    %s32 = sadd.s32 %s25, 1
    %s34 = sadd.s32 %s33, 1
    %p37 = scmp.eq.s32.totalorder %s25, 4
    %p38 = scmp.ne.s32.totalorder %s33, %s35
    %p39 = scmp.eq.s32.totalorder %s25, 0
    %p40 = por %p38, %p39
    %p41 = scmp.ne.s32.totalorder %s33, %s35
    %p42 = scmp.eq.s32.totalorder %s30, 4
    %p43 = por %p41, %p42
    %p44 = scmp.ne.s32.totalorder %s35, %s36
    %p45 = scmp.eq.s32.totalorder %s30, 0
    %p46 = por %p44, %p45
    %p47 = scmp.ne.s32.totalorder %s35, %s36
    %p48 = scmp.eq.s32.totalorder %s31, 4
    %p49 = por %p47, %p48
    %p51 = scmp.ne.s32.totalorder %s36, %s50
    %p52 = scmp.eq.s32.totalorder %s31, 0
    %p53 = por %p51, %p52
    %s55 = sadd.s32 %s54, 1
    %p58 = scmp.eq.s32.totalorder %s25, 4
    %p59 = scmp.ne.s32.totalorder %s54, %s56
    %p60 = scmp.eq.s32.totalorder %s25, 0
    %p61 = por %p59, %p60
    %p62 = scmp.ne.s32.totalorder %s54, %s56
    %p63 = scmp.eq.s32.totalorder %s30, 4
    %p64 = por %p62, %p63
    %p65 = scmp.ne.s32.totalorder %s56, %s57
    %p66 = scmp.eq.s32.totalorder %s30, 0
    %p67 = por %p65, %p66
    %p68 = scmp.ne.s32.totalorder %s56, %s57
    %p69 = scmp.eq.s32.totalorder %s31, 4
    %p70 = por %p68, %p69
    %p72 = scmp.ne.s32.totalorder %s57, %s71
    %p73 = scmp.eq.s32.totalorder %s31, 0
    %p74 = por %p72, %p73
    %s76 = sadd.s32 %s75, 1
    %p79 = scmp.eq.s32.totalorder %s25, 4
    %p80 = scmp.ne.s32.totalorder %s75, %s77
    %p81 = scmp.eq.s32.totalorder %s25, 0
    %p82 = por %p80, %p81
    %p83 = scmp.ne.s32.totalorder %s75, %s77
    %p84 = scmp.eq.s32.totalorder %s30, 4
    %p85 = por %p83, %p84
    %p86 = scmp.ne.s32.totalorder %s77, %s78
    %p87 = scmp.eq.s32.totalorder %s30, 0
    %p88 = por %p86, %p87
    %p89 = scmp.ne.s32.totalorder %s77, %s78
    %p90 = scmp.eq.s32.totalorder %s31, 4
    %p91 = por %p89, %p90
    %p93 = scmp.ne.s32.totalorder %s78, %s92
    %p94 = scmp.eq.s32.totalorder %s31, 0
    %p95 = por %p93, %p94
    %s97 = sadd.s32 %s96, 1
    %p100 = scmp.eq.s32.totalorder %s25, 4
    %p101 = scmp.ne.s32.totalorder %s96, %s98
    %p102 = scmp.eq.s32.totalorder %s25, 0
    %p103 = por %p101, %p102
    %p104 = scmp.ne.s32.totalorder %s96, %s98
    %p105 = scmp.eq.s32.totalorder %s30, 4
    %p106 = por %p104, %p105
    %p107 = scmp.ne.s32.totalorder %s98, %s99
    %p108 = scmp.eq.s32.totalorder %s30, 0
    %p109 = por %p107, %p108
    %p110 = scmp.ne.s32.totalorder %s98, %s99
    %p111 = scmp.eq.s32.totalorder %s31, 4
    %p112 = por %p110, %p111
    %p114 = scmp.ne.s32.totalorder %s99, %s113
    %p115 = scmp.eq.s32.totalorder %s31, 0
    %p116 = por %p114, %p115
    %s118 = sadd.s32 %s117, 1
    %p121 = scmp.eq.s32.totalorder %s25, 4
    %p122 = scmp.ne.s32.totalorder %s117, %s119
    %p123 = scmp.eq.s32.totalorder %s25, 0
    %p124 = por %p122, %p123
    %p125 = scmp.ne.s32.totalorder %s117, %s119
    %p126 = scmp.eq.s32.totalorder %s30, 4
    %p127 = por %p125, %p126
    %p128 = scmp.ne.s32.totalorder %s119, %s120
    %p129 = scmp.eq.s32.totalorder %s30, 0
    %p130 = por %p128, %p129
    %p131 = scmp.ne.s32.totalorder %s119, %s120
    %p132 = scmp.eq.s32.totalorder %s31, 4
    %p133 = por %p131, %p132
    %p135 = scmp.ne.s32.totalorder %s120, %s134
    %p136 = scmp.eq.s32.totalorder %s31, 0
    %p137 = por %p135, %p136
    %s139 = sadd.s32 %s138, 1
    %p142 = scmp.eq.s32.totalorder %s25, 4
    %p143 = scmp.ne.s32.totalorder %s138, %s140
    %p144 = scmp.eq.s32.totalorder %s25, 0
    %p145 = por %p143, %p144
    %p146 = scmp.ne.s32.totalorder %s138, %s140
    %p147 = scmp.eq.s32.totalorder %s30, 4
    %p148 = por %p146, %p147
    %p149 = scmp.ne.s32.totalorder %s140, %s141
    %p150 = scmp.eq.s32.totalorder %s30, 0
    %p151 = por %p149, %p150
    %p152 = scmp.ne.s32.totalorder %s140, %s141
    %p153 = scmp.eq.s32.totalorder %s31, 4
    %p154 = por %p152, %p153
    %p156 = scmp.ne.s32.totalorder %s141, %s155
    %p157 = scmp.eq.s32.totalorder %s31, 0
    %p158 = por %p156, %p157
    %s160 = sadd.s32 %s159, 1
    %p163 = scmp.eq.s32.totalorder %s25, 4
    %p164 = scmp.ne.s32.totalorder %s159, %s161
    %p165 = scmp.eq.s32.totalorder %s25, 0
    %p166 = por %p164, %p165
    %p167 = scmp.ne.s32.totalorder %s159, %s161
    %p168 = scmp.eq.s32.totalorder %s30, 4
    %p169 = por %p167, %p168
    %p170 = scmp.ne.s32.totalorder %s161, %s162
    %p171 = scmp.eq.s32.totalorder %s30, 0
    %p172 = por %p170, %p171
    %p173 = scmp.ne.s32.totalorder %s161, %s162
    %p174 = scmp.eq.s32.totalorder %s31, 4
    %p175 = por %p173, %p174
    %p177 = scmp.ne.s32.totalorder %s162, %s176
    %p178 = scmp.eq.s32.totalorder %s31, 0
    %p179 = por %p177, %p178
    %s181 = sadd.s32 %s180, 1
    %p184 = scmp.eq.s32.totalorder %s25, 4
    %p185 = scmp.ne.s32.totalorder %s180, %s182
    %p186 = scmp.eq.s32.totalorder %s25, 0
    %p187 = por %p185, %p186
    %p188 = scmp.ne.s32.totalorder %s180, %s182
    %p189 = scmp.eq.s32.totalorder %s30, 4
    %p190 = por %p188, %p189
    %p191 = scmp.ne.s32.totalorder %s182, %s183
    %p192 = scmp.eq.s32.totalorder %s30, 0
    %p193 = por %p191, %p192
    %p194 = scmp.ne.s32.totalorder %s182, %s183
    %p195 = scmp.eq.s32.totalorder %s31, 4
    %p196 = por %p194, %p195
    %p198 = scmp.ne.s32.totalorder %s183, %s197
    %p199 = scmp.eq.s32.totalorder %s31, 0
    %p200 = por %p198, %p199
    %s202 = sadd.s32 %s201, 1
    %p205 = scmp.eq.s32.totalorder %s25, 4
    %p206 = scmp.ne.s32.totalorder %s201, %s203
    %p207 = scmp.eq.s32.totalorder %s25, 0
    %p208 = por %p206, %p207
    %p209 = scmp.ne.s32.totalorder %s201, %s203
    %p210 = scmp.eq.s32.totalorder %s30, 4
    %p211 = por %p209, %p210
    %p212 = scmp.ne.s32.totalorder %s203, %s204
    %p213 = scmp.eq.s32.totalorder %s30, 0
    %p214 = por %p212, %p213
    %p215 = scmp.ne.s32.totalorder %s203, %s204
    %p216 = scmp.eq.s32.totalorder %s31, 4
    %p217 = por %p215, %p216
    %p219 = scmp.ne.s32.totalorder %s204, %s218
    %p220 = scmp.eq.s32.totalorder %s31, 0
    %p221 = por %p219, %p220
    %s223 = sadd.s32 %s222, 1
    %p226 = scmp.eq.s32.totalorder %s25, 4
    %p227 = scmp.ne.s32.totalorder %s222, %s224
    %p228 = scmp.eq.s32.totalorder %s25, 0
    %p229 = por %p227, %p228
    %p230 = scmp.ne.s32.totalorder %s222, %s224
    %p231 = scmp.eq.s32.totalorder %s30, 4
    %p232 = por %p230, %p231
    %p233 = scmp.ne.s32.totalorder %s224, %s225
    %p234 = scmp.eq.s32.totalorder %s30, 0
    %p235 = por %p233, %p234
    %p236 = scmp.ne.s32.totalorder %s224, %s225
    %p237 = scmp.eq.s32.totalorder %s31, 4
    %p238 = por %p236, %p237
    %p240 = scmp.ne.s32.totalorder %s225, %s239
    %p241 = scmp.eq.s32.totalorder %s31, 0
    %p242 = por %p240, %p241
    %s244 = sadd.s32 %s243, 1
    %p247 = scmp.eq.s32.totalorder %s25, 4
    %p248 = scmp.ne.s32.totalorder %s243, %s245
    %p249 = scmp.eq.s32.totalorder %s25, 0
    %p250 = por %p248, %p249
    %p251 = scmp.ne.s32.totalorder %s243, %s245
    %p252 = scmp.eq.s32.totalorder %s30, 4
    %p253 = por %p251, %p252
    %p254 = scmp.ne.s32.totalorder %s245, %s246
    %p255 = scmp.eq.s32.totalorder %s30, 0
    %p256 = por %p254, %p255
    %p257 = scmp.ne.s32.totalorder %s245, %s246
    %p258 = scmp.eq.s32.totalorder %s31, 4
    %p259 = por %p257, %p258
    %p261 = scmp.ne.s32.totalorder %s246, %s260
    %p262 = scmp.eq.s32.totalorder %s31, 0
    %p263 = por %p261, %p262
    %s265 = sadd.s32 %s264, 1
    %p268 = scmp.eq.s32.totalorder %s25, 4
    %p269 = scmp.ne.s32.totalorder %s264, %s266
    %p270 = scmp.eq.s32.totalorder %s25, 0
    %p271 = por %p269, %p270
    %p272 = scmp.ne.s32.totalorder %s264, %s266
    %p273 = scmp.eq.s32.totalorder %s30, 4
    %p274 = por %p272, %p273
    %p275 = scmp.ne.s32.totalorder %s266, %s267
    %p276 = scmp.eq.s32.totalorder %s30, 0
    %p277 = por %p275, %p276
    %p278 = scmp.ne.s32.totalorder %s266, %s267
    %p279 = scmp.eq.s32.totalorder %s31, 4
    %p280 = por %p278, %p279
    %p282 = scmp.ne.s32.totalorder %s267, %s281
    %p283 = scmp.eq.s32.totalorder %s31, 0
    %p284 = por %p282, %p283
    %s285 = ssub.s32 %s25, %s32
    %p286 = scmp.eq.s32.totalorder %s285, 0
    %s288 = sadd.s32 %s287, 1
    %s289 = scalar_select %p286, %s287, %s288
    %p292 = pneg %p286
    %p293 = scmp.eq.s32.totalorder %s25, 4
    %p294 = por %p292, %p293
    %p295 = scmp.ne.s32.totalorder %s287, %s290
    %p296 = scmp.eq.s32.totalorder %s25, 0
    %p297 = por %p295, %p296
    %p298 = scmp.ne.s32.totalorder %s287, %s290
    %p299 = scmp.eq.s32.totalorder %s30, 4
    %p300 = por %p298, %p299
    %p301 = scmp.ne.s32.totalorder %s290, %s291
    %p302 = scmp.eq.s32.totalorder %s30, 0
    %p303 = por %p301, %p302
    %p304 = scmp.ne.s32.totalorder %s290, %s291
    %p305 = scmp.eq.s32.totalorder %s31, 4
    %p306 = por %p304, %p305
    %p308 = scmp.ne.s32.totalorder %s291, %s307
    %p309 = scmp.eq.s32.totalorder %s31, 0
    %p310 = por %p308, %p309
    %p311 = scmp.le.s32.totalorder 1, %s25
    %p312 = scmp.lt.s32.totalorder %s25, 6
    %p313 = pnand %p311, %p312
    %p314 = pneg %p313
    // Predicated region
    $region9: #{tpu_custom_call.1} parent=5 // pred_check
      _
    $region10: #{tpu_custom_call.1} parent=5 // pred_check_branch
      %316 = sbr.rel (%p313) target = $region12
    $region11: #{tpu_custom_call.1} parent=5 // pred_region
      %s317 = ssub.s32 %s25, 1
      // Predicated region
      $region13: #{tpu_custom_call.1} parent=11 // pred_check
        %p318 = pneg %p46
      $region14: #{tpu_custom_call.1} parent=11 // pred_check_branch
        %320 = sbr.rel (%p318) target = $region16
      $region15: #{tpu_custom_call.1} parent=11 // pred_region
        _
      $region16: #{tpu_custom_call.1} parent=11 // pred_fallthru
        _
      // Predicated region
      $region17: #{tpu_custom_call.1} parent=11 // pred_check
        %p321 = pneg %p67
      $region18: #{tpu_custom_call.1} parent=11 // pred_check_branch
        %323 = sbr.rel (%p321) target = $region20
      $region19: #{tpu_custom_call.1} parent=11 // pred_region
        _
      $region20: #{tpu_custom_call.1} parent=11 // pred_fallthru
        _
      // Predicated region
      $region21: #{tpu_custom_call.1} parent=11 // pred_check
        %p324 = pneg %p88
      $region22: #{tpu_custom_call.1} parent=11 // pred_check_branch
        %326 = sbr.rel (%p324) target = $region24
      $region23: #{tpu_custom_call.1} parent=11 // pred_region
        _
      $region24: #{tpu_custom_call.1} parent=11 // pred_fallthru
        _
      // Predicated region
      $region25: #{tpu_custom_call.1} parent=11 // pred_check
        %p327 = pneg %p109
      $region26: #{tpu_custom_call.1} parent=11 // pred_check_branch
        %329 = sbr.rel (%p327) target = $region28
      $region27: #{tpu_custom_call.1} parent=11 // pred_region
        _
      $region28: #{tpu_custom_call.1} parent=11 // pred_fallthru
        _
      // Predicated region
      $region29: #{tpu_custom_call.1} parent=11 // pred_check
        %p330 = pneg %p130
      $region30: #{tpu_custom_call.1} parent=11 // pred_check_branch
        %332 = sbr.rel (%p330) target = $region32
      $region31: #{tpu_custom_call.1} parent=11 // pred_region
        _
      $region32: #{tpu_custom_call.1} parent=11 // pred_fallthru
        _
      // Predicated region
      $region33: #{tpu_custom_call.1} parent=11 // pred_check
        %p333 = pneg %p151
      $region34: #{tpu_custom_call.1} parent=11 // pred_check_branch
        %335 = sbr.rel (%p333) target = $region36
      $region35: #{tpu_custom_call.1} parent=11 // pred_region
        _
      $region36: #{tpu_custom_call.1} parent=11 // pred_fallthru
        _
      // Predicated region
      $region37: #{tpu_custom_call.1} parent=11 // pred_check
        %p336 = pneg %p172
      $region38: #{tpu_custom_call.1} parent=11 // pred_check_branch
        %338 = sbr.rel (%p336) target = $region40
      $region39: #{tpu_custom_call.1} parent=11 // pred_region
        _
      $region40: #{tpu_custom_call.1} parent=11 // pred_fallthru
        _
      // Predicated region
      $region41: #{tpu_custom_call.1} parent=11 // pred_check
        %p339 = pneg %p193
      $region42: #{tpu_custom_call.1} parent=11 // pred_check_branch
        %341 = sbr.rel (%p339) target = $region44
      $region43: #{tpu_custom_call.1} parent=11 // pred_region
        _
      $region44: #{tpu_custom_call.1} parent=11 // pred_fallthru
        _
      // Predicated region
      $region45: #{tpu_custom_call.1} parent=11 // pred_check
        %p342 = pneg %p214
      $region46: #{tpu_custom_call.1} parent=11 // pred_check_branch
        %344 = sbr.rel (%p342) target = $region48
      $region47: #{tpu_custom_call.1} parent=11 // pred_region
        _
      $region48: #{tpu_custom_call.1} parent=11 // pred_fallthru
        _
      // Predicated region
      $region49: #{tpu_custom_call.1} parent=11 // pred_check
        %p345 = pneg %p235
      $region50: #{tpu_custom_call.1} parent=11 // pred_check_branch
        %347 = sbr.rel (%p345) target = $region52
      $region51: #{tpu_custom_call.1} parent=11 // pred_region
        _
      $region52: #{tpu_custom_call.1} parent=11 // pred_fallthru
        _
      // Predicated region
      $region53: #{tpu_custom_call.1} parent=11 // pred_check
        %p348 = pneg %p256
      $region54: #{tpu_custom_call.1} parent=11 // pred_check_branch
        %350 = sbr.rel (%p348) target = $region56
      $region55: #{tpu_custom_call.1} parent=11 // pred_region
        _
      $region56: #{tpu_custom_call.1} parent=11 // pred_fallthru
        _
      // Predicated region
      $region57: #{tpu_custom_call.1} parent=11 // pred_check
        %p351 = pneg %p277
      $region58: #{tpu_custom_call.1} parent=11 // pred_check_branch
        %353 = sbr.rel (%p351) target = $region60
      $region59: #{tpu_custom_call.1} parent=11 // pred_region
        _
      $region60: #{tpu_custom_call.1} parent=11 // pred_fallthru
        _
    $region12: #{tpu_custom_call.1} parent=5 // pred_fallthru
      _
    %p354 = scmp.lt.s32.totalorder %s25, 5
    // Predicated region
    $region61: #{tpu_custom_call.1} parent=5 // pred_check
      %p355 = pneg %p354
    $region62: #{tpu_custom_call.1} parent=5 // pred_check_branch
      %357 = sbr.rel (%p355) target = $region64
    $region63: #{tpu_custom_call.1} parent=5 // pred_region
      _
    $region64: #{tpu_custom_call.1} parent=5 // pred_fallthru
      _
    %p358 = scmp.le.s32.totalorder 1, %s25
    %p359 = scmp.lt.s32.totalorder %s25, 6
    %p360 = pnand %p358, %p359
    %p361 = pneg %p360
    // Predicated region
    $region65: #{tpu_custom_call.1} parent=5 // pred_check
      _
    $region66: #{tpu_custom_call.1} parent=5 // pred_check_branch
      %363 = sbr.rel (%p360) target = $region68
    $region67: #{tpu_custom_call.1} parent=5 // pred_region
      %s364 = ssub.s32 %s25, 1
      %p365 = pneg %p46
      %p366 = pneg %p43
      %p367 = pneg %p67
      %p368 = pneg %p64
      %p369 = pneg %p88
      %p370 = pneg %p85
      %p371 = pneg %p109
      %p372 = pneg %p106
      %p373 = pneg %p130
      %p374 = pneg %p127
      %p375 = pneg %p151
      %p376 = pneg %p148
      %p377 = pneg %p172
      %p378 = pneg %p169
      %p379 = pneg %p193
      %p380 = pneg %p190
      %p381 = pneg %p214
      %p382 = pneg %p211
      %p383 = pneg %p235
      %p384 = pneg %p232
      %p385 = pneg %p256
      %p386 = pneg %p253
      %p387 = pneg %p277
      %p388 = pneg %p274
      %p389 = pneg %p303
      %p390 = pneg %p300
      %p391 = scmp.lt.s32.totalorder %s30, 4
      %s392 = scalar_select %p391, %s30, 4
      %s393 = smul.addr %s392, 4
      %s394 = smul.addr %s393, 8
      %s395 = scalar_lea.vmem %s13, %s394
      %p396 = scmp.lt.s32.totalorder %s30, 4
      %s397 = scalar_select %p396, %s30, 4
      %s398 = smul.addr %s397, 4
      %s399 = smul.addr %s398, 8
      %s400 = scalar_lea.vmem %s13, %s399
      %p401 = scmp.eq.s32.totalorder %s30, 0
      // Predicated region
      $region69: #{tpu_custom_call.1} parent=67 // pred_check
        %p402 = pneg %p401
      $region70: #{tpu_custom_call.1} parent=67 // pred_check_branch
        %404 = sbr.rel (%p402) target = $region72
      $region71: #{tpu_custom_call.1} parent=67 // pred_region
        %v405 = vld [vmem:[%s1] sm:$0xff]
        %v406 = vld [vmem:[%s1 + $0x8] sm:$0xff]
        %v407 = vld [vmem:[%s1 + $0x10] sm:$0xff]
        %v408 = vld [vmem:[%s1 + $0x18] sm:$0xff]
        %vm409 = vcmask 64512
        %410 = vst.msk [vmem:[#allocation2] sm:$0xff] %vm409, %v405
        %411 = vst.msk [vmem:[#allocation2 + $0x8] sm:$0xff] %vm409, %v406
        %412 = vst.msk [vmem:[#allocation2 + $0x10] sm:$0xff] %vm409, %v407
        %413 = vst.msk [vmem:[#allocation2 + $0x18] sm:$0xff] %vm409, %v408
      $region72: #{tpu_custom_call.1} parent=67 // pred_fallthru
        _
      %p414 = scmp.gt.s32.totalorder %s30, 0
      // Predicated region
      $region73: #{tpu_custom_call.1} parent=67 // pred_check
        %p415 = pneg %p414
      $region74: #{tpu_custom_call.1} parent=67 // pred_check_branch
        %417 = sbr.rel (%p415) target = $region76
      $region75: #{tpu_custom_call.1} parent=67 // pred_region
        %v418 = vld [vmem:[#allocation2] sm:$0xff]
        %v419 = vld [vmem:[#allocation2 + $0x8] sm:$0xff]
        %v420 = vld [vmem:[#allocation2 + $0x10] sm:$0xff]
        %v421 = vld [vmem:[#allocation2 + $0x18] sm:$0xff]
        %v422 = vld [vmem:[%s2] sm:$0xff]
        %v423 = vld [vmem:[%s2 + $0x8] sm:$0xff]
        %v424 = vld [vmem:[%s3] sm:$0xff]
        %v425 = vld [vmem:[%s4] sm:$0x1]
        %v427 = vlaneseq
        %v428 = vshrl.u32 %v427, 7
        %v429 = vsub.s32 0, %v428
        %v430 = vrot.slane %v425, %v429
        %vm432 = vcmask 64512
        %v434 = vsel %vm432, %v418, 0
        %v437 = vsel %vm432, %v419, 0
        %v440 = vsel %vm432, %v420, 0
        %v443 = vsel %vm432, %v421, 0
        %445 = vmatprep.subr.mxu0 0.0
        %446 = vmatpush1.msra.mxu0 0.0
        %447 = vmatprep.subr.mxu0 0.0
        %448 = vmatpush1.msra.mxu0 0.0
        %449 = vmatprep.subr.mxu0 0.0
        %450 = vmatpush1.msra.mxu0 0.0
        %451 = vmatprep.subr.mxu0 0.0
        %452 = vmatpush1.msra.mxu0 0.0
        %453 = vmatprep.subr.mxu0 0.0
        %454 = vmatpush1.msra.mxu0 0.0
        %455 = vmatprep.subr.mxu0 0.0
        %456 = vmatpush1.msra.mxu0 0.0
        %457 = vmatprep.subr.mxu0 0.0
        %458 = vmatpush1.msra.mxu0 0.0
        %459 = vmatprep.subr.mxu0 0.0
        %460 = vmatpush1.msra.mxu0 0.0
        %461 = vmatprep.subr.mxu0 0.0
        %462 = vmatpush1.msra.mxu0 0.0
        %463 = vmatprep.subr.mxu0 0.0
        %464 = vmatpush1.msra.mxu0 0.0
        %465 = vmatprep.subr.mxu0 0.0
        %466 = vmatpush1.msra.mxu0 0.0
        %467 = vmatprep.subr.mxu0 0.0
        %468 = vmatpush1.msra.mxu0 0.0
        %469 = vmatprep.subr.mxu0 0.0
        %470 = vmatpush1.msra.mxu0 0.0
        %471 = vmatprep.subr.mxu0 0.0
        %472 = vmatpush1.msra.mxu0 0.0
        %473 = vmatprep.subr.mxu0 0.0
        %474 = vmatpush1.msra.mxu0 0.0
        %475 = vmatprep.subr.mxu0 0.0
        %476 = vmatpush1.msra.mxu0 %v424
        %477 = vmatprep.subr.mxu0 0.0
        %478 = vmatpush2.msra.mxu0 0.0
        %479 = vmatprep.subr.mxu0 0.0
        %480 = vmatpush2.msra.mxu0 0.0
        %481 = vmatprep.subr.mxu0 0.0
        %482 = vmatpush2.msra.mxu0 0.0
        %483 = vmatprep.subr.mxu0 0.0
        %484 = vmatpush2.msra.mxu0 0.0
        %485 = vmatprep.subr.mxu0 0.0
        %486 = vmatpush2.msra.mxu0 0.0
        %487 = vmatprep.subr.mxu0 0.0
        %488 = vmatpush2.msra.mxu0 0.0
        %489 = vmatprep.subr.mxu0 0.0
        %490 = vmatpush2.msra.mxu0 0.0
        %491 = vmatprep.subr.mxu0 0.0
        %492 = vmatpush2.msra.mxu0 0.0
        %493 = vmatprep.subr.mxu0 0.0
        %494 = vmatpush2.msra.mxu0 0.0
        %495 = vmatprep.subr.mxu0 0.0
        %496 = vmatpush2.msra.mxu0 0.0
        %497 = vmatprep.subr.mxu0 0.0
        %498 = vmatpush2.msra.mxu0 0.0
        %499 = vmatprep.subr.mxu0 0.0
        %500 = vmatpush2.msra.mxu0 0.0
        %501 = vmatprep.subr.mxu0 0.0
        %502 = vmatpush2.msra.mxu0 0.0
        %503 = vmatprep.subr.mxu0 0.0
        %504 = vmatpush2.msra.mxu0 0.0
        %505 = vmatprep.subr.mxu0 0.0
        %506 = vmatpush2.msra.mxu0 0.0
        %507 = vmatprep.subr.mxu0 0.0
        %508 = vmatpush2.msra.mxu0 0.0
        %509 = vmatprep.mubr.f32.mxu0 0.0
        %510 = vmatmul.mubr.f32.gmra.mxu0 %v434
        %v511 = vpop.f32.mrf.mxu0
        %v512 = vadd.f32 %v430, %v511
        %v513 = vpop.f32.mrf.mxu0
        %514 = vmatprep.mubr.f32.mxu0 0.0
        %515 = vmatmul.mubr.f32.gmra.mxu0 %v437
        %v516 = vpop.f32.mrf.mxu0
        %v517 = vadd.f32 %v430, %v516
        %v518 = vpop.f32.mrf.mxu0
        %519 = vmatprep.mubr.f32.mxu0 0.0
        %520 = vmatmul.mubr.f32.gmra.mxu0 %v440
        %v521 = vpop.f32.mrf.mxu0
        %v522 = vadd.f32 %v430, %v521
        %v523 = vpop.f32.mrf.mxu0
        %524 = vmatprep.mubr.f32.mxu0 0.0
        %525 = vmatmul.mubr.f32.gmra.mxu0 %v443
        %v526 = vpop.f32.mrf.mxu0
        %v527 = vadd.f32 %v430, %v526
        %v528 = vpop.f32.mrf.mxu0
        %529 = vdwg.mxu0
        %v530 = vmax.f32 %v512, 0.0
        %v531 = vmax.f32 %v517, 0.0
        %v532 = vmax.f32 %v522, 0.0
        %v533 = vmax.f32 %v527, 0.0
        %v534 = vld [vmem:[%s5] sm:$0xff]
        %v535 = vld [vmem:[%s5 + $0x8] sm:$0xff]
        %v536 = vld [vmem:[%s5 + $0x10] sm:$0xff]
        %v537 = vld [vmem:[%s5 + $0x18] sm:$0xff]
        %v538 = vld [vmem:[%s6] sm:$0x1]
        %v540 = vlaneseq
        %v541 = vshrl.u32 %v540, 7
        %v542 = vsub.s32 0, %v541
        %v543 = vrot.slane %v538, %v542
        %vm545 = vcmask 261120
        %v547 = vsel %vm545, %v530, 0
        %v550 = vsel %vm545, %v531, 0
        %v553 = vsel %vm545, %v532, 0
        %v556 = vsel %vm545, %v533, 0
        %558 = vmatprep.subr.mxu0 0.0
        %559 = vmatpush1.msra.mxu0 0.0
        %560 = vmatprep.subr.mxu0 0.0
        %561 = vmatpush1.msra.mxu0 0.0
        %562 = vmatprep.subr.mxu0 0.0
        %563 = vmatpush1.msra.mxu0 0.0
        %564 = vmatprep.subr.mxu0 0.0
        %565 = vmatpush1.msra.mxu0 0.0
        %566 = vmatprep.subr.mxu0 0.0
        %567 = vmatpush1.msra.mxu0 0.0
        %568 = vmatprep.subr.mxu0 0.0
        %569 = vmatpush1.msra.mxu0 0.0
        %570 = vmatprep.subr.mxu0 0.0
        %571 = vmatpush1.msra.mxu0 0.0
        %572 = vmatprep.subr.mxu0 0.0
        %573 = vmatpush1.msra.mxu0 0.0
        %574 = vmatprep.subr.mxu0 0.0
        %575 = vmatpush1.msra.mxu0 0.0
        %576 = vmatprep.subr.mxu0 0.0
        %577 = vmatpush1.msra.mxu0 0.0
        %578 = vmatprep.subr.mxu0 0.0
        %579 = vmatpush1.msra.mxu0 0.0
        %580 = vmatprep.subr.mxu0 0.0
        %581 = vmatpush1.msra.mxu0 0.0
        %582 = vmatprep.subr.mxu0 0.0
        %583 = vmatpush1.msra.mxu0 %v537
        %584 = vmatprep.subr.mxu0 0.0
        %585 = vmatpush1.msra.mxu0 %v536
        %586 = vmatprep.subr.mxu0 0.0
        %587 = vmatpush1.msra.mxu0 %v535
        %588 = vmatprep.subr.mxu0 0.0
        %589 = vmatpush1.msra.mxu0 %v534
        %590 = vmatprep.subr.mxu0 0.0
        %591 = vmatpush2.msra.mxu0 0.0
        %592 = vmatprep.subr.mxu0 0.0
        %593 = vmatpush2.msra.mxu0 0.0
        %594 = vmatprep.subr.mxu0 0.0
        %595 = vmatpush2.msra.mxu0 0.0
        %596 = vmatprep.subr.mxu0 0.0
        %597 = vmatpush2.msra.mxu0 0.0
        %598 = vmatprep.subr.mxu0 0.0
        %599 = vmatpush2.msra.mxu0 0.0
        %600 = vmatprep.subr.mxu0 0.0
        %601 = vmatpush2.msra.mxu0 0.0
        %602 = vmatprep.subr.mxu0 0.0
        %603 = vmatpush2.msra.mxu0 0.0
        %604 = vmatprep.subr.mxu0 0.0
        %605 = vmatpush2.msra.mxu0 0.0
        %606 = vmatprep.subr.mxu0 0.0
        %607 = vmatpush2.msra.mxu0 0.0
        %608 = vmatprep.subr.mxu0 0.0
        %609 = vmatpush2.msra.mxu0 0.0
        %610 = vmatprep.subr.mxu0 0.0
        %611 = vmatpush2.msra.mxu0 0.0
        %612 = vmatprep.subr.mxu0 0.0
        %613 = vmatpush2.msra.mxu0 0.0
        %614 = vmatprep.subr.mxu0 0.0
        %615 = vmatpush2.msra.mxu0 0.0
        %616 = vmatprep.subr.mxu0 0.0
        %617 = vmatpush2.msra.mxu0 0.0
        %618 = vmatprep.subr.mxu0 0.0
        %619 = vmatpush2.msra.mxu0 0.0
        %620 = vmatprep.subr.mxu0 0.0
        %621 = vmatpush2.msra.mxu0 0.0
        %622 = vmatprep.mubr.f32.mxu0 0.0
        %623 = vmatmul.mubr.f32.gmra.mxu0 %v547
        %v624 = vpop.f32.mrf.mxu0
        %v625 = vadd.f32 %v543, %v624
        %v626 = vpop.f32.mrf.mxu0
        %627 = vmatprep.mubr.f32.mxu0 0.0
        %628 = vmatmul.mubr.f32.gmra.mxu0 %v550
        %v629 = vpop.f32.mrf.mxu0
        %v630 = vadd.f32 %v543, %v629
        %v631 = vpop.f32.mrf.mxu0
        %632 = vmatprep.mubr.f32.mxu0 0.0
        %633 = vmatmul.mubr.f32.gmra.mxu0 %v553
        %v634 = vpop.f32.mrf.mxu0
        %v635 = vadd.f32 %v543, %v634
        %v636 = vpop.f32.mrf.mxu0
        %637 = vmatprep.mubr.f32.mxu0 0.0
        %638 = vmatmul.mubr.f32.gmra.mxu0 %v556
        %v639 = vpop.f32.mrf.mxu0
        %v640 = vadd.f32 %v543, %v639
        %v641 = vpop.f32.mrf.mxu0
        %642 = vdwg.mxu0
        %v643 = vld [vmem:[%s7] sm:$0xff]
        %v644 = vld [vmem:[%s7 + $0x8] sm:$0xff]
        %v645 = vld [vmem:[%s7 + $0x10] sm:$0xff]
        %v646 = vld [vmem:[%s7 + $0x18] sm:$0xff]
        %v647 = vld [vmem:[%s8] sm:$0x1]
        %v649 = vlaneseq
        %v650 = vshrl.u32 %v649, 7
        %v651 = vsub.s32 0, %v650
        %v652 = vrot.slane %v647, %v651
        %654 = vrot.lane.b32.xlu0 %v530, 96
        %v655 = vpop.permute.xlu0 %654
        %656 = vrot.lane.b32.xlu0 %v531, 96
        %v657 = vpop.permute.xlu0 %656
        %658 = vrot.lane.b32.xlu0 %v532, 96
        %v659 = vpop.permute.xlu0 %658
        %660 = vrot.lane.b32.xlu0 %v533, 96
        %v661 = vpop.permute.xlu0 %660
        %v662 = vsel %vm545, %v655, 0
        %v664 = vsel %vm545, %v657, 0
        %v666 = vsel %vm545, %v659, 0
        %v668 = vsel %vm545, %v661, 0
        %670 = vmatprep.subr.mxu0 0.0
        %671 = vmatpush1.msra.mxu0 0.0
        %672 = vmatprep.subr.mxu0 0.0
        %673 = vmatpush1.msra.mxu0 0.0
        %674 = vmatprep.subr.mxu0 0.0
        %675 = vmatpush1.msra.mxu0 0.0
        %676 = vmatprep.subr.mxu0 0.0
        %677 = vmatpush1.msra.mxu0 0.0
        %678 = vmatprep.subr.mxu0 0.0
        %679 = vmatpush1.msra.mxu0 0.0
        %680 = vmatprep.subr.mxu0 0.0
        %681 = vmatpush1.msra.mxu0 0.0
        %682 = vmatprep.subr.mxu0 0.0
        %683 = vmatpush1.msra.mxu0 0.0
        %684 = vmatprep.subr.mxu0 0.0
        %685 = vmatpush1.msra.mxu0 0.0
        %686 = vmatprep.subr.mxu0 0.0
        %687 = vmatpush1.msra.mxu0 0.0
        %688 = vmatprep.subr.mxu0 0.0
        %689 = vmatpush1.msra.mxu0 0.0
        %690 = vmatprep.subr.mxu0 0.0
        %691 = vmatpush1.msra.mxu0 0.0
        %692 = vmatprep.subr.mxu0 0.0
        %693 = vmatpush1.msra.mxu0 0.0
        %694 = vmatprep.subr.mxu0 0.0
        %695 = vmatpush1.msra.mxu0 %v646
        %696 = vmatprep.subr.mxu0 0.0
        %697 = vmatpush1.msra.mxu0 %v645
        %698 = vmatprep.subr.mxu0 0.0
        %699 = vmatpush1.msra.mxu0 %v644
        %700 = vmatprep.subr.mxu0 0.0
        %701 = vmatpush1.msra.mxu0 %v643
        %702 = vmatprep.subr.mxu0 0.0
        %703 = vmatpush2.msra.mxu0 0.0
        %704 = vmatprep.subr.mxu0 0.0
        %705 = vmatpush2.msra.mxu0 0.0
        %706 = vmatprep.subr.mxu0 0.0
        %707 = vmatpush2.msra.mxu0 0.0
        %708 = vmatprep.subr.mxu0 0.0
        %709 = vmatpush2.msra.mxu0 0.0
        %710 = vmatprep.subr.mxu0 0.0
        %711 = vmatpush2.msra.mxu0 0.0
        %712 = vmatprep.subr.mxu0 0.0
        %713 = vmatpush2.msra.mxu0 0.0
        %714 = vmatprep.subr.mxu0 0.0
        %715 = vmatpush2.msra.mxu0 0.0
        %716 = vmatprep.subr.mxu0 0.0
        %717 = vmatpush2.msra.mxu0 0.0
        %718 = vmatprep.subr.mxu0 0.0
        %719 = vmatpush2.msra.mxu0 0.0
        %720 = vmatprep.subr.mxu0 0.0
        %721 = vmatpush2.msra.mxu0 0.0
        %722 = vmatprep.subr.mxu0 0.0
        %723 = vmatpush2.msra.mxu0 0.0
        %724 = vmatprep.subr.mxu0 0.0
        %725 = vmatpush2.msra.mxu0 0.0
        %726 = vmatprep.subr.mxu0 0.0
        %727 = vmatpush2.msra.mxu0 0.0
        %728 = vmatprep.subr.mxu0 0.0
        %729 = vmatpush2.msra.mxu0 0.0
        %730 = vmatprep.subr.mxu0 0.0
        %731 = vmatpush2.msra.mxu0 0.0
        %732 = vmatprep.subr.mxu0 0.0
        %733 = vmatpush2.msra.mxu0 0.0
        %734 = vmatprep.mubr.f32.mxu0 0.0
        %735 = vmatmul.mubr.f32.gmra.mxu0 %v662
        %v736 = vpop.f32.mrf.mxu0
        %v737 = vadd.f32 %v652, %v736
        %v738 = vpop.f32.mrf.mxu0
        %739 = vmatprep.mubr.f32.mxu0 0.0
        %740 = vmatmul.mubr.f32.gmra.mxu0 %v664
        %v741 = vpop.f32.mrf.mxu0
        %v742 = vadd.f32 %v652, %v741
        %v743 = vpop.f32.mrf.mxu0
        %744 = vmatprep.mubr.f32.mxu0 0.0
        %745 = vmatmul.mubr.f32.gmra.mxu0 %v666
        %v746 = vpop.f32.mrf.mxu0
        %v747 = vadd.f32 %v652, %v746
        %v748 = vpop.f32.mrf.mxu0
        %749 = vmatprep.mubr.f32.mxu0 0.0
        %750 = vmatmul.mubr.f32.gmra.mxu0 %v668
        %v751 = vpop.f32.mrf.mxu0
        %v752 = vadd.f32 %v652, %v751
        %v753 = vpop.f32.mrf.mxu0
        %754 = vdwg.mxu0
        %vm755 = vcmask 130048
        %v757 = vsel %vm755, %v422, 0
        %v760 = vsel %vm755, %v423, 0
        %762 = vmatprep.subr.mxu0 0.0
        %763 = vmatpush1.msra.mxu0 0.0
        %764 = vmatprep.subr.mxu0 0.0
        %765 = vmatpush1.msra.mxu0 0.0
        %766 = vmatprep.subr.mxu0 0.0
        %767 = vmatpush1.msra.mxu0 0.0
        %768 = vmatprep.subr.mxu0 0.0
        %769 = vmatpush1.msra.mxu0 0.0
        %770 = vmatprep.subr.mxu0 0.0
        %771 = vmatpush1.msra.mxu0 0.0
        %772 = vmatprep.subr.mxu0 0.0
        %773 = vmatpush1.msra.mxu0 0.0
        %774 = vmatprep.subr.mxu0 0.0
        %775 = vmatpush1.msra.mxu0 0.0
        %776 = vmatprep.subr.mxu0 0.0
        %777 = vmatpush1.msra.mxu0 0.0
        %778 = vmatprep.subr.mxu0 0.0
        %779 = vmatpush1.msra.mxu0 0.0
        %780 = vmatprep.subr.mxu0 0.0
        %781 = vmatpush1.msra.mxu0 0.0
        %782 = vmatprep.subr.mxu0 0.0
        %783 = vmatpush1.msra.mxu0 0.0
        %784 = vmatprep.subr.mxu0 0.0
        %785 = vmatpush1.msra.mxu0 0.0
        %786 = vmatprep.subr.mxu0 0.0
        %787 = vmatpush1.msra.mxu0 0.0
        %788 = vmatprep.subr.mxu0 0.0
        %789 = vmatpush1.msra.mxu0 0.0
        %790 = vmatprep.subr.mxu0 0.0
        %791 = vmatpush1.msra.mxu0 %v742
        %792 = vmatprep.subr.mxu0 0.0
        %793 = vmatpush1.msra.mxu0 %v737
        %794 = vmatprep.subr.mxu0 0.0
        %795 = vmatpush2.msra.mxu0 0.0
        %796 = vmatprep.subr.mxu0 0.0
        %797 = vmatpush2.msra.mxu0 0.0
        %798 = vmatprep.subr.mxu0 0.0
        %799 = vmatpush2.msra.mxu0 0.0
        %800 = vmatprep.subr.mxu0 0.0
        %801 = vmatpush2.msra.mxu0 0.0
        %802 = vmatprep.subr.mxu0 0.0
        %803 = vmatpush2.msra.mxu0 0.0
        %804 = vmatprep.subr.mxu0 0.0
        %805 = vmatpush2.msra.mxu0 0.0
        %806 = vmatprep.subr.mxu0 0.0
        %807 = vmatpush2.msra.mxu0 0.0
        %808 = vmatprep.subr.mxu0 0.0
        %809 = vmatpush2.msra.mxu0 0.0
        %810 = vmatprep.subr.mxu0 0.0
        %811 = vmatpush2.msra.mxu0 0.0
        %812 = vmatprep.subr.mxu0 0.0
        %813 = vmatpush2.msra.mxu0 0.0
        %814 = vmatprep.subr.mxu0 0.0
        %815 = vmatpush2.msra.mxu0 0.0
        %816 = vmatprep.subr.mxu0 0.0
        %817 = vmatpush2.msra.mxu0 0.0
        %818 = vmatprep.subr.mxu0 0.0
        %819 = vmatpush2.msra.mxu0 0.0
        %820 = vmatprep.subr.mxu0 0.0
        %821 = vmatpush2.msra.mxu0 0.0
        %822 = vmatprep.subr.mxu0 0.0
        %823 = vmatpush2.msra.mxu0 0.0
        %824 = vmatprep.subr.mxu0 0.0
        %825 = vmatpush2.msra.mxu0 0.0
        %826 = vmatprep.mubr.f32.mxu0 0.0
        %827 = vmatmul.mubr.f32.gmra.mxu0 %v757
        %v828 = vpop.f32.mrf.mxu0
        %v829 = vadd.f32 0.0, %v828
        %v830 = vpop.f32.mrf.mxu0
        %831 = vmatprep.mubr.f32.mxu0 0.0
        %832 = vmatmul.mubr.f32.gmra.mxu0 %v760
        %v833 = vpop.f32.mrf.mxu0
        %v834 = vadd.f32 0.0, %v833
        %v835 = vpop.f32.mrf.mxu0
        %836 = vdwg.mxu0
        %837 = vst.msk [vmem:[#allocation3] sm:$0xff] %vm545, %v829
        %838 = vst.msk [vmem:[#allocation3 + $0x8] sm:$0xff] %vm545, %v834
        %839 = vmatprep.subr.mxu0 0.0
        %840 = vmatpush1.msra.mxu0 0.0
        %841 = vmatprep.subr.mxu0 0.0
        %842 = vmatpush1.msra.mxu0 0.0
        %843 = vmatprep.subr.mxu0 0.0
        %844 = vmatpush1.msra.mxu0 0.0
        %845 = vmatprep.subr.mxu0 0.0
        %846 = vmatpush1.msra.mxu0 0.0
        %847 = vmatprep.subr.mxu0 0.0
        %848 = vmatpush1.msra.mxu0 0.0
        %849 = vmatprep.subr.mxu0 0.0
        %850 = vmatpush1.msra.mxu0 0.0
        %851 = vmatprep.subr.mxu0 0.0
        %852 = vmatpush1.msra.mxu0 0.0
        %853 = vmatprep.subr.mxu0 0.0
        %854 = vmatpush1.msra.mxu0 0.0
        %855 = vmatprep.subr.mxu0 0.0
        %856 = vmatpush1.msra.mxu0 0.0
        %857 = vmatprep.subr.mxu0 0.0
        %858 = vmatpush1.msra.mxu0 0.0
        %859 = vmatprep.subr.mxu0 0.0
        %860 = vmatpush1.msra.mxu0 0.0
        %861 = vmatprep.subr.mxu0 0.0
        %862 = vmatpush1.msra.mxu0 0.0
        %863 = vmatprep.subr.mxu0 0.0
        %864 = vmatpush1.msra.mxu0 0.0
        %865 = vmatprep.subr.mxu0 0.0
        %866 = vmatpush1.msra.mxu0 0.0
        %867 = vmatprep.subr.mxu0 0.0
        %868 = vmatpush1.msra.mxu0 %v752
        %869 = vmatprep.subr.mxu0 0.0
        %870 = vmatpush1.msra.mxu0 %v747
        %871 = vmatprep.subr.mxu0 0.0
        %872 = vmatpush2.msra.mxu0 0.0
        %873 = vmatprep.subr.mxu0 0.0
        %874 = vmatpush2.msra.mxu0 0.0
        %875 = vmatprep.subr.mxu0 0.0
        %876 = vmatpush2.msra.mxu0 0.0
        %877 = vmatprep.subr.mxu0 0.0
        %878 = vmatpush2.msra.mxu0 0.0
        %879 = vmatprep.subr.mxu0 0.0
        %880 = vmatpush2.msra.mxu0 0.0
        %881 = vmatprep.subr.mxu0 0.0
        %882 = vmatpush2.msra.mxu0 0.0
        %883 = vmatprep.subr.mxu0 0.0
        %884 = vmatpush2.msra.mxu0 0.0
        %885 = vmatprep.subr.mxu0 0.0
        %886 = vmatpush2.msra.mxu0 0.0
        %887 = vmatprep.subr.mxu0 0.0
        %888 = vmatpush2.msra.mxu0 0.0
        %889 = vmatprep.subr.mxu0 0.0
        %890 = vmatpush2.msra.mxu0 0.0
        %891 = vmatprep.subr.mxu0 0.0
        %892 = vmatpush2.msra.mxu0 0.0
        %893 = vmatprep.subr.mxu0 0.0
        %894 = vmatpush2.msra.mxu0 0.0
        %895 = vmatprep.subr.mxu0 0.0
        %896 = vmatpush2.msra.mxu0 0.0
        %897 = vmatprep.subr.mxu0 0.0
        %898 = vmatpush2.msra.mxu0 0.0
        %899 = vmatprep.subr.mxu0 0.0
        %900 = vmatpush2.msra.mxu0 0.0
        %901 = vmatprep.subr.mxu0 0.0
        %902 = vmatpush2.msra.mxu0 0.0
        %903 = vmatprep.mubr.f32.mxu0 0.0
        %904 = vmatmul.mubr.f32.gmra.mxu0 %v757
        %v905 = vpop.f32.mrf.mxu0
        %v906 = vadd.f32 0.0, %v905
        %v907 = vpop.f32.mrf.mxu0
        %908 = vmatprep.mubr.f32.mxu0 0.0
        %909 = vmatmul.mubr.f32.gmra.mxu0 %v760
        %v910 = vpop.f32.mrf.mxu0
        %v911 = vadd.f32 0.0, %v910
        %v912 = vpop.f32.mrf.mxu0
        %913 = vdwg.mxu0
        %914 = vst.msk [vmem:[#allocation3 + $0x10] sm:$0xff] %vm545, %v906
        %915 = vst.msk [vmem:[#allocation3 + $0x18] sm:$0xff] %vm545, %v911
        %v916 = vld [vmem:[#allocation3] sm:$0xff]
        %v917 = vld [vmem:[#allocation3 + $0x8] sm:$0xff]
        %v918 = vld [vmem:[#allocation3 + $0x10] sm:$0xff]
        %v919 = vld [vmem:[#allocation3 + $0x18] sm:$0xff]
        %v920 = vld [vmem:[%s9] sm:$0xff]
        %v921 = vld [vmem:[%s9 + $0x8] sm:$0xff]
        %v922 = vld [vmem:[%s9 + $0x10] sm:$0xff]
        %v923 = vld [vmem:[%s9 + $0x18] sm:$0xff]
        %v924 = vld [vmem:[%s10] sm:$0x1]
        %v926 = vlaneseq
        %v927 = vshrl.u32 %v926, 7
        %v928 = vsub.s32 0, %v927
        %v929 = vrot.slane %v924, %v928
        %v932 = vsel %vm545, %v916, 0
        %v935 = vsel %vm545, %v917, 0
        %v938 = vsel %vm545, %v918, 0
        %v941 = vsel %vm545, %v919, 0
        %943 = vmatprep.subr.mxu0 0.0
        %944 = vmatpush1.msra.mxu0 0.0
        %945 = vmatprep.subr.mxu0 0.0
        %946 = vmatpush1.msra.mxu0 0.0
        %947 = vmatprep.subr.mxu0 0.0
        %948 = vmatpush1.msra.mxu0 0.0
        %949 = vmatprep.subr.mxu0 0.0
        %950 = vmatpush1.msra.mxu0 0.0
        %951 = vmatprep.subr.mxu0 0.0
        %952 = vmatpush1.msra.mxu0 0.0
        %953 = vmatprep.subr.mxu0 0.0
        %954 = vmatpush1.msra.mxu0 0.0
        %955 = vmatprep.subr.mxu0 0.0
        %956 = vmatpush1.msra.mxu0 0.0
        %957 = vmatprep.subr.mxu0 0.0
        %958 = vmatpush1.msra.mxu0 0.0
        %959 = vmatprep.subr.mxu0 0.0
        %960 = vmatpush1.msra.mxu0 0.0
        %961 = vmatprep.subr.mxu0 0.0
        %962 = vmatpush1.msra.mxu0 0.0
        %963 = vmatprep.subr.mxu0 0.0
        %964 = vmatpush1.msra.mxu0 0.0
        %965 = vmatprep.subr.mxu0 0.0
        %966 = vmatpush1.msra.mxu0 0.0
        %967 = vmatprep.subr.mxu0 0.0
        %968 = vmatpush1.msra.mxu0 %v923
        %969 = vmatprep.subr.mxu0 0.0
        %970 = vmatpush1.msra.mxu0 %v922
        %971 = vmatprep.subr.mxu0 0.0
        %972 = vmatpush1.msra.mxu0 %v921
        %973 = vmatprep.subr.mxu0 0.0
        %974 = vmatpush1.msra.mxu0 %v920
        %975 = vmatprep.subr.mxu0 0.0
        %976 = vmatpush2.msra.mxu0 0.0
        %977 = vmatprep.subr.mxu0 0.0
        %978 = vmatpush2.msra.mxu0 0.0
        %979 = vmatprep.subr.mxu0 0.0
        %980 = vmatpush2.msra.mxu0 0.0
        %981 = vmatprep.subr.mxu0 0.0
        %982 = vmatpush2.msra.mxu0 0.0
        %983 = vmatprep.subr.mxu0 0.0
        %984 = vmatpush2.msra.mxu0 0.0
        %985 = vmatprep.subr.mxu0 0.0
        %986 = vmatpush2.msra.mxu0 0.0
        %987 = vmatprep.subr.mxu0 0.0
        %988 = vmatpush2.msra.mxu0 0.0
        %989 = vmatprep.subr.mxu0 0.0
        %990 = vmatpush2.msra.mxu0 0.0
        %991 = vmatprep.subr.mxu0 0.0
        %992 = vmatpush2.msra.mxu0 0.0
        %993 = vmatprep.subr.mxu0 0.0
        %994 = vmatpush2.msra.mxu0 0.0
        %995 = vmatprep.subr.mxu0 0.0
        %996 = vmatpush2.msra.mxu0 0.0
        %997 = vmatprep.subr.mxu0 0.0
        %998 = vmatpush2.msra.mxu0 0.0
        %999 = vmatprep.subr.mxu0 0.0
        %1000 = vmatpush2.msra.mxu0 0.0
        %1001 = vmatprep.subr.mxu0 0.0
        %1002 = vmatpush2.msra.mxu0 0.0
        %1003 = vmatprep.subr.mxu0 0.0
        %1004 = vmatpush2.msra.mxu0 0.0
        %1005 = vmatprep.subr.mxu0 0.0
        %1006 = vmatpush2.msra.mxu0 0.0
        %1007 = vmatprep.mubr.f32.mxu0 0.0
        %1008 = vmatmul.mubr.f32.gmra.mxu0 %v932
        %v1009 = vpop.f32.mrf.mxu0
        %v1010 = vadd.f32 %v929, %v1009
        %v1011 = vpop.f32.mrf.mxu0
        %1012 = vmatprep.mubr.f32.mxu0 0.0
        %1013 = vmatmul.mubr.f32.gmra.mxu0 %v935
        %v1014 = vpop.f32.mrf.mxu0
        %v1015 = vadd.f32 %v929, %v1014
        %v1016 = vpop.f32.mrf.mxu0
        %1017 = vmatprep.mubr.f32.mxu0 0.0
        %1018 = vmatmul.mubr.f32.gmra.mxu0 %v938
        %v1019 = vpop.f32.mrf.mxu0
        %v1020 = vadd.f32 %v929, %v1019
        %v1021 = vpop.f32.mrf.mxu0
        %1022 = vmatprep.mubr.f32.mxu0 0.0
        %1023 = vmatmul.mubr.f32.gmra.mxu0 %v941
        %v1024 = vpop.f32.mrf.mxu0
        %v1025 = vadd.f32 %v929, %v1024
        %v1026 = vpop.f32.mrf.mxu0
        %1027 = vdwg.mxu0
        %v1028 = vmax.f32 %v1010, 0.0
        %v1029 = vmax.f32 %v1015, 0.0
        %v1030 = vmax.f32 %v1020, 0.0
        %v1031 = vmax.f32 %v1025, 0.0
        %v1032 = vld [vmem:[%s11] sm:$0xff]
        %v1033 = vld [vmem:[%s11 + $0x8] sm:$0xff]
        %v1034 = vld [vmem:[%s11 + $0x10] sm:$0xff]
        %v1035 = vld [vmem:[%s11 + $0x18] sm:$0xff]
        %v1036 = vld [vmem:[%s12] sm:$0x1]
        %v1038 = vlaneseq
        %v1039 = vshrl.u32 %v1038, 7
        %v1040 = vsub.s32 0, %v1039
        %v1041 = vrot.slane %v1036, %v1040
        %v1044 = vsel %vm545, %v1028, 0
        %v1047 = vsel %vm545, %v1029, 0
        %v1050 = vsel %vm545, %v1030, 0
        %v1053 = vsel %vm545, %v1031, 0
        %1055 = vmatprep.subr.mxu0 0.0
        %1056 = vmatpush1.msra.mxu0 0.0
        %1057 = vmatprep.subr.mxu0 0.0
        %1058 = vmatpush1.msra.mxu0 0.0
        %1059 = vmatprep.subr.mxu0 0.0
        %1060 = vmatpush1.msra.mxu0 0.0
        %1061 = vmatprep.subr.mxu0 0.0
        %1062 = vmatpush1.msra.mxu0 0.0
        %1063 = vmatprep.subr.mxu0 0.0
        %1064 = vmatpush1.msra.mxu0 0.0
        %1065 = vmatprep.subr.mxu0 0.0
        %1066 = vmatpush1.msra.mxu0 0.0
        %1067 = vmatprep.subr.mxu0 0.0
        %1068 = vmatpush1.msra.mxu0 0.0
        %1069 = vmatprep.subr.mxu0 0.0
        %1070 = vmatpush1.msra.mxu0 0.0
        %1071 = vmatprep.subr.mxu0 0.0
        %1072 = vmatpush1.msra.mxu0 0.0
        %1073 = vmatprep.subr.mxu0 0.0
        %1074 = vmatpush1.msra.mxu0 0.0
        %1075 = vmatprep.subr.mxu0 0.0
        %1076 = vmatpush1.msra.mxu0 0.0
        %1077 = vmatprep.subr.mxu0 0.0
        %1078 = vmatpush1.msra.mxu0 0.0
        %1079 = vmatprep.subr.mxu0 0.0
        %1080 = vmatpush1.msra.mxu0 %v1035
        %1081 = vmatprep.subr.mxu0 0.0
        %1082 = vmatpush1.msra.mxu0 %v1034
        %1083 = vmatprep.subr.mxu0 0.0
        %1084 = vmatpush1.msra.mxu0 %v1033
        %1085 = vmatprep.subr.mxu0 0.0
        %1086 = vmatpush1.msra.mxu0 %v1032
        %1087 = vmatprep.subr.mxu0 0.0
        %1088 = vmatpush2.msra.mxu0 0.0
        %1089 = vmatprep.subr.mxu0 0.0
        %1090 = vmatpush2.msra.mxu0 0.0
        %1091 = vmatprep.subr.mxu0 0.0
        %1092 = vmatpush2.msra.mxu0 0.0
        %1093 = vmatprep.subr.mxu0 0.0
        %1094 = vmatpush2.msra.mxu0 0.0
        %1095 = vmatprep.subr.mxu0 0.0
        %1096 = vmatpush2.msra.mxu0 0.0
        %1097 = vmatprep.subr.mxu0 0.0
        %1098 = vmatpush2.msra.mxu0 0.0
        %1099 = vmatprep.subr.mxu0 0.0
        %1100 = vmatpush2.msra.mxu0 0.0
        %1101 = vmatprep.subr.mxu0 0.0
        %1102 = vmatpush2.msra.mxu0 0.0
        %1103 = vmatprep.subr.mxu0 0.0
        %1104 = vmatpush2.msra.mxu0 0.0
        %1105 = vmatprep.subr.mxu0 0.0
        %1106 = vmatpush2.msra.mxu0 0.0
        %1107 = vmatprep.subr.mxu0 0.0
        %1108 = vmatpush2.msra.mxu0 0.0
        %1109 = vmatprep.subr.mxu0 0.0
        %1110 = vmatpush2.msra.mxu0 0.0
        %1111 = vmatprep.subr.mxu0 0.0
        %1112 = vmatpush2.msra.mxu0 0.0
        %1113 = vmatprep.subr.mxu0 0.0
        %1114 = vmatpush2.msra.mxu0 0.0
        %1115 = vmatprep.subr.mxu0 0.0
        %1116 = vmatpush2.msra.mxu0 0.0
        %1117 = vmatprep.subr.mxu0 0.0
        %1118 = vmatpush2.msra.mxu0 0.0
        %1119 = vmatprep.mubr.f32.mxu0 0.0
        %1120 = vmatmul.mubr.f32.gmra.mxu0 %v1044
        %v1121 = vpop.f32.mrf.mxu0
        %v1122 = vadd.f32 %v1041, %v1121
        %v1123 = vpop.f32.mrf.mxu0
        %1124 = vmatprep.mubr.f32.mxu0 0.0
        %1125 = vmatmul.mubr.f32.gmra.mxu0 %v1047
        %v1126 = vpop.f32.mrf.mxu0
        %v1127 = vadd.f32 %v1041, %v1126
        %v1128 = vpop.f32.mrf.mxu0
        %1129 = vmatprep.mubr.f32.mxu0 0.0
        %1130 = vmatmul.mubr.f32.gmra.mxu0 %v1050
        %v1131 = vpop.f32.mrf.mxu0
        %v1132 = vadd.f32 %v1041, %v1131
        %v1133 = vpop.f32.mrf.mxu0
        %1134 = vmatprep.mubr.f32.mxu0 0.0
        %1135 = vmatmul.mubr.f32.gmra.mxu0 %v1053
        %v1136 = vpop.f32.mrf.mxu0
        %v1137 = vadd.f32 %v1041, %v1136
        %v1138 = vpop.f32.mrf.mxu0
        %1139 = vdwg.mxu0
        %s1140 = sld [smem:[#allocation5 + %s30]]
        %v1141 = vadd.f32 %v625, %v1122
        %v1142 = vadd.f32 %v630, %v1127
        %v1143 = vadd.f32 %v635, %v1132
        %v1144 = vadd.f32 %v640, %v1137
        %v1145 = vstv %s1140
        %v1146 = vmul.f32 %v1145, %v1141
        %v1147 = vmul.f32 %v1145, %v1142
        %v1148 = vmul.f32 %v1145, %v1143
        %v1149 = vmul.f32 %v1145, %v1144
        %v1150 = vadd.f32 %v418, %v1146
        %v1151 = vadd.f32 %v419, %v1147
        %v1152 = vadd.f32 %v420, %v1148
        %v1153 = vadd.f32 %v421, %v1149
        %1154 = vst.msk [vmem:[#allocation2] sm:$0xff] %vm432, %v1150
        %1155 = vst.msk [vmem:[#allocation2 + $0x8] sm:$0xff] %vm432, %v1151
        %1156 = vst.msk [vmem:[#allocation2 + $0x10] sm:$0xff] %vm432, %v1152
        %1157 = vst.msk [vmem:[#allocation2 + $0x18] sm:$0xff] %vm432, %v1153
      $region76: #{tpu_custom_call.1} parent=67 // pred_fallthru
        _
      %v1158 = vld [vmem:[#allocation2] sm:$0xff]
      %v1159 = vld [vmem:[#allocation2 + $0x8] sm:$0xff]
      %v1160 = vld [vmem:[#allocation2 + $0x10] sm:$0xff]
      %v1161 = vld [vmem:[#allocation2 + $0x18] sm:$0xff]
      %vm1162 = vcmask 64512
      %1163 = vst.msk [vmem:[%s400] sm:$0xff] %vm1162, %v1158
      %1164 = vst.msk [vmem:[%s400 + $0x8] sm:$0xff] %vm1162, %v1159
      %1165 = vst.msk [vmem:[%s400 + $0x10] sm:$0xff] %vm1162, %v1160
      %1166 = vst.msk [vmem:[%s400 + $0x18] sm:$0xff] %vm1162, %v1161
      %p1167 = scmp.lt.s32.totalorder %s30, 4
      %s1168 = scalar_select %p1167, %s30, 4
      %s1169 = smul.addr %s1168, 4
      %s1170 = smul.addr %s1169, 8
      %s1171 = scalar_lea.vmem %s13, %s1170
      // Predicated region
      $region77: #{tpu_custom_call.1} parent=67 // pred_check
        %p1172 = pneg %p300
      $region78: #{tpu_custom_call.1} parent=67 // pred_check_branch
        %1174 = sbr.rel (%p1172) target = $region80
      $region79: #{tpu_custom_call.1} parent=67 // pred_region
        _
      $region80: #{tpu_custom_call.1} parent=67 // pred_fallthru
        _
    $region68: #{tpu_custom_call.1} parent=5 // pred_fallthru
      _
    %p1175 = scmp.le.s32.totalorder 2, %s25
    // Predicated region
    $region81: #{tpu_custom_call.1} parent=5 // pred_check
      %p1176 = pneg %p1175
    $region82: #{tpu_custom_call.1} parent=5 // pred_check_branch
      %1178 = sbr.rel (%p1176) target = $region84
    $region83: #{tpu_custom_call.1} parent=5 // pred_region
      %s1179 = ssub.s32 %s25, 2
      // Predicated region
      $region85: #{tpu_custom_call.1} parent=83 // pred_check
        %p1180 = pneg %p306
      $region86: #{tpu_custom_call.1} parent=83 // pred_check_branch
        %1182 = sbr.rel (%p1180) target = $region88
      $region87: #{tpu_custom_call.1} parent=83 // pred_region
        %p1183 = scmp.lt.s32.totalorder %s31, 4
        %s1184 = scalar_select %p1183, %s31, 4
        %s1185 = smul.addr %s1184, 4
        %s1186 = smul.addr %s1185, 8
        %s1187 = scalar_lea.vmem %s13, %s1186
      $region88: #{tpu_custom_call.1} parent=83 // pred_fallthru
        _
    $region84: #{tpu_custom_call.1} parent=5 // pred_fallthru
      _
  $region6: #{tpu_custom_call.1} parent=0 // loop_footer
    %s29 = sadd.s32 1, %s25
  $region7: #{tpu_custom_call.1} parent=0 // loop_footer_branch
    %24 = sbr.rel target = $region3
  $region8: #{tpu_custom_call.1} parent=0 // loop_exit
    _

</llo_original>
